<compile_context>
chip_gen: v7x
topology: tpu7x:2x2x1
jax: 0.10.0
libtpu: 0.0.40
codegen_flags: <defaults>
</compile_context>

<pallas_src>
import jax
import jax.numpy as jnp
from jax.experimental import pallas as pl
from jax.experimental.pallas import tpu as pltpu


def _round_up(x, n):
    return ((x + n - 1) // n) * n


def _detect_tpu():
    """Best-effort (VMEM bytes, TensorCores-per-device) query with safe fallbacks."""
    vmem = 64 * 1024 * 1024          # conservative default = v7x physical VMEM
    cores = 1
    try:
        info = pltpu.get_tpu_info()
        for name in ("vmem_capacity_bytes", "vmem_bytes"):
            v = getattr(info, name, None)
            if isinstance(v, int) and v > 0:
                vmem = v
                break
        for name in ("num_tensorcores", "num_cores", "tensorcores_per_chip",
                     "cores_per_chip"):
            c = getattr(info, name, None)
            if isinstance(c, int) and c > 0:
                cores = c
                break
    except Exception:
        pass
    if cores == 1:
        try:
            d = jax.devices()[0]
            for name in ("num_cores", "core_count"):
                c = getattr(d, name, None)
                if isinstance(c, int) and c > 0:
                    cores = c
                    break
        except Exception:
            pass
    return vmem, cores


_PHYS_VMEM, _NUM_CORES = _detect_tpu()
# Scoped VMEM limit: <= 3/4 of physical and leave >= 16 MiB headroom
# (v7x 64 MiB -> 48 MiB; v5e/v6e 128 MiB -> 96 MiB).
_VMEM_LIMIT_BYTES = max(32 * 1024 * 1024,
                        min(_PHYS_VMEM * 3 // 4, _PHYS_VMEM - 16 * 1024 * 1024))
# Working-set budget used to size tm: half the scoped limit, leaving room for
# compiler-internal scratch and layout temporaries the estimate can't see.
_VMEM_TILE_BUDGET = max(16 * 1024 * 1024, _VMEM_LIMIT_BYTES // 2)
_TM_CAP = 4096


def _mlp_head_kernel(x_ref, w1_ref, b1_ref, w2_ref, b2_ref, pred_ref):
    # x_ref:    (TM, dim)            f32  (cast to bf16 in-kernel; tail rows of
    #                                      the ragged last block are garbage)
    # w1_ref:   (dim, hidden_p)      bf16
    # b1_ref:   (1, hidden_p)        f32
    # w2_ref:   (hidden_p, Cp)       bf16
    # b2_ref:   (1, Cp)              f32   (padded classes carry -1e30 bias)
    # pred_ref: (1, TM//128, 128)    int32 (lane-dense prediction tile)
    x = x_ref[...].astype(jnp.bfloat16)
    h = jnp.dot(x, w1_ref[...], preferred_element_type=jnp.float32)
    h = jnp.maximum(h + b1_ref[...], 0.0)                  # f32 bias + ReLU
    logits = jnp.dot(h.astype(jnp.bfloat16), w2_ref[...],
                     preferred_element_type=jnp.float32) + b2_ref[...]
    # .float() is implicit: accumulation and bias add are already f32.
    pred = jnp.argmax(logits, axis=-1).astype(jnp.int32)   # (TM,)
    pred_ref[...] = pred.reshape(pred_ref.shape)


def _pick_row_tile(m, dim, hidden_p, classes_p):
    """Row tile (multiple of 128, <= _TM_CAP) from the VMEM budget + core count."""
    per_row = (dim * 4 * 2             # f32 x tile, double-buffered by the pipeline
               + dim * 2               # in-kernel bf16 copy of x
               + hidden_p * (4 + 2)    # f32 h + bf16 copy fed to the 2nd matmul
               + classes_p * 4         # f32 logits
               + 4 * 2)                # int32 predictions, double-buffered
    # Grid-invariant weights/biases: pipeline still allocates 2 buffers each.
    weight_bytes = 2 * (2 * (dim * hidden_p + hidden_p * classes_p)
                        + 4 * (hidden_p + classes_p))
    avail = max(_VMEM_TILE_BUDGET - weight_bytes, 128 * per_row)
    tm_budget = max(128, min(_TM_CAP, (avail // per_row) // 128 * 128))

    m128 = _round_up(m, 128)
    if _NUM_CORES > 1:
        # Multi-TensorCore (v7x): aim for ~2 blocks per core so each core's
        # x DMA overlaps its compute; never drop below one 128-row tile.
        tm_split = _round_up(-(-m128 // (2 * _NUM_CORES)), 128)
        return max(128, min(tm_budget, tm_split))
    # Single TensorCore (v5e/v6e): one block covering all of m when it fits —
    # no forced extra grid step / pipeline prologue.
    return max(128, min(tm_budget, m128))


def prepare_params(w1, b1, w2, b2):
    """Pre-transpose / pad PyTorch-layout Linear params (call once, not per step)."""
    hidden, dim = w1.shape            # nn.Linear weight is (out, in)
    classes = w2.shape[0]
    hidden_p = _round_up(hidden, 128)
    classes_p = _round_up(classes, 128)

    w1t = jnp.zeros((dim, hidden_p), jnp.bfloat16).at[:, :hidden].set(
        w1.T.astype(jnp.bfloat16))
    b1p = jnp.zeros((1, hidden_p), jnp.float32).at[:, :hidden].set(
        b1.astype(jnp.float32))
    w2t = jnp.zeros((hidden_p, classes_p), jnp.bfloat16).at[:hidden, :classes].set(
        w2.T.astype(jnp.bfloat16))
    # Padded class columns get a very negative bias so argmax never picks them.
    b2p = jnp.full((1, classes_p), -1e30, jnp.float32).at[:, :classes].set(
        b2.astype(jnp.float32))
    return w1t, b1p, w2t, b2p


@jax.jit
def mlp_head_forward(features, w1t, b1p, w2t, b2p):
    """features: (..., dim) float32; params from prepare_params().
    Returns {'segs_pred': int32 array of shape features.shape[:-1]}."""
    dim = features.shape[-1]
    lead = features.shape[:-1]
    hidden_p = w1t.shape[1]
    classes_p = w2t.shape[1]

    # Pure metadata reshape — no HBM pass; dtype stays f32 (cast is in-kernel).
    x = features.reshape(-1, dim)
    m = x.shape[0]

    tm = _pick_row_tile(m, dim, hidden_p, classes_p)
    n_blocks = -(-m // tm)
    m_pad = n_blocks * tm             # rows covered incl. ragged-tail garbage

    flops = 2 * m_pad * dim * hidden_p + 2 * m_pad * hidden_p * classes_p
    bytes_accessed = (m_pad * dim * 4                  # x (f32)
                      + dim * hidden_p * 2             # W1 (bf16)
                      + hidden_p * classes_p * 2       # W2 (bf16)
                      + (hidden_p + classes_p) * 4     # biases (f32)
                      + m_pad * 4)                     # predictions (int32)
    cost = pl.CostEstimate(flops=flops, transcendentals=0,
                           bytes_accessed=bytes_accessed)

    pred = pl.pallas_call(
        _mlp_head_kernel,
        out_shape=jax.ShapeDtypeStruct((n_blocks, tm // 128, 128), jnp.int32),
        grid=(n_blocks,),
        in_specs=[
            # Ragged last block: Pallas fetches only the valid rows; the tail
            # of the VMEM tile is garbage and its preds are sliced off below.
            pl.BlockSpec((tm, dim), lambda i: (i, 0)),
            # Constant block indices: DMA issued once per core, reused after.
            pl.BlockSpec((dim, hidden_p), lambda i: (0, 0)),
            pl.BlockSpec((1, hidden_p), lambda i: (0, 0)),
            pl.BlockSpec((hidden_p, classes_p), lambda i: (0, 0)),
            pl.BlockSpec((1, classes_p), lambda i: (0, 0)),
        ],
        out_specs=pl.BlockSpec((1, tm // 128, 128), lambda i: (i, 0, 0)),
        compiler_params=pltpu.CompilerParams(
            dimension_semantics=("parallel",),
            vmem_limit_bytes=_VMEM_LIMIT_BYTES),
        cost_estimate=cost,
    )(x, w1t, b1p, w2t, b2p)

    # Drop the garbage tail produced by the ragged last block.
    segs_pred = pred.reshape(-1)[:m].reshape(lead)
    return {"segs_pred": segs_pred}


def init_params(key, dim, gt_classes):
    """Deterministic init mimicking nn.Linear default (uniform +-1/sqrt(fan_in))."""
    k1, k2, k3, k4 = jax.random.split(key, 4)
    hidden = 2 * dim
    bound1 = 1.0 / (dim ** 0.5)
    bound2 = 1.0 / (hidden ** 0.5)
    w1 = jax.random.uniform(k1, (hidden, dim), jnp.float32, -bound1, bound1)
    b1 = jax.random.uniform(k2, (hidden,), jnp.float32, -bound1, bound1)
    w2 = jax.random.uniform(k3, (gt_classes, hidden), jnp.float32, -bound2, bound2)
    b2 = jax.random.uniform(k4, (gt_classes,), jnp.float32, -bound2, bound2)
    return w1, b1, w2, b2


if __name__ == "__main__":
    key = jax.random.PRNGKey(0)
    k_feat, k_param = jax.random.split(key)

    B, N, DIM, CLASSES = 2, 8, 32, 10          # small shapes: (batch, seq, dim)
    features = jax.random.normal(k_feat, (B, N, DIM), jnp.float32)
    w1, b1, w2, b2 = init_params(k_param, DIM, CLASSES)

    params = prepare_params(w1, b1, w2, b2)    # one-time transpose/pad
    out = mlp_head_forward(features, *params)
    segs_pred = jax.block_until_ready(out["segs_pred"])
    assert segs_pred.shape == (B, N)
    assert segs_pred.dtype == jnp.int32

    # Reference at matched precision (bf16 matmuls, f32 accumulation/elementwise).
    # NOTE: bf16 operands can flip argmax vs a pure-f32 torch reference only in
    # near-tie cases; the tie tolerance below covers that.
    w1t, b1p, w2t, b2p = params
    xb = features.reshape(-1, DIM).astype(jnp.bfloat16)
    h_ref = jnp.maximum(
        jnp.dot(xb, w1t, preferred_element_type=jnp.float32) + b1p, 0.0)
    logits_ref = jnp.dot(h_ref.astype(jnp.bfloat16), w2t,
                         preferred_element_type=jnp.float32) + b2p
    ref_pred = jnp.argmax(logits_ref, axis=-1).astype(jnp.int32)

    kern_cls = segs_pred.reshape(-1)
    ref_max = logits_ref.max(axis=-1)
    kern_val = jnp.take_along_axis(logits_ref, kern_cls[:, None], axis=-1)[:, 0]
    ok = (kern_cls == ref_pred) | (ref_max - kern_val <= 1e-3)  # allow exact ties
    assert bool(jnp.all(ok)), "mismatch vs reference"

    print("KERNEL_OK")
</pallas_src>

<mosaic_0001>
module attributes {stable_mosaic.version = 11 : i64} {
  func.func @_mlp_head_kernel(%arg0: i32, %arg1: memref<128x32xf32, #tpu.memory_space<vmem>>, %arg2: memref<32x128xbf16, #tpu.memory_space<vmem>>, %arg3: memref<1x128xf32, #tpu.memory_space<vmem>>, %arg4: memref<128x128xbf16, #tpu.memory_space<vmem>>, %arg5: memref<1x128xf32, #tpu.memory_space<vmem>>, %arg6: memref<1x1x128xi32, #tpu.memory_space<vmem>>) attributes {dimension_semantics = [#tpu.dimension_semantics<parallel>], iteration_bounds = array<i64: 1>, scalar_prefetch = 0 : i64, scratch_operands = 0 : i64, tpu.core_type = #tpu.core_type<tc>, window_params = [{transform_indices = @transform_0, window_bounds = array<i64: 128, 32>}, {pipeline_mode = #tpu.pipeline_mode<synchronous>, transform_indices = @transform_1, window_bounds = array<i64: 32, 128>}, {pipeline_mode = #tpu.pipeline_mode<synchronous>, transform_indices = @transform_2, window_bounds = array<i64: 1, 128>}, {pipeline_mode = #tpu.pipeline_mode<synchronous>, transform_indices = @transform_3, window_bounds = array<i64: 128, 128>}, {pipeline_mode = #tpu.pipeline_mode<synchronous>, transform_indices = @transform_4, window_bounds = array<i64: 1, 128>}, {transform_indices = @transform_5, window_bounds = array<i64: 1, 1, 128>}]} {
    %c0 = arith.constant 0 : index
    %c0_0 = arith.constant 0 : index
    %0 = vector.load %arg1[%c0, %c0_0] : memref<128x32xf32, #tpu.memory_space<vmem>>, vector<128x32xf32>
    %1 = arith.truncf %0 : vector<128x32xf32> to vector<128x32xbf16>
    %c0_1 = arith.constant 0 : index
    %c0_2 = arith.constant 0 : index
    %2 = vector.load %arg2[%c0_1, %c0_2] : memref<32x128xbf16, #tpu.memory_space<vmem>>, vector<32x128xbf16>
    %cst = arith.constant dense<0.000000e+00> : vector<128x128xf32>
    %3 = tpu.matmul %1, %2, %cst {dimension_numbers = #tpu.dot_dimension_numbers<[1], [0], [0], [1], [0, 0, 1, 1], [], []>} : vector<128x32xbf16>, vector<32x128xbf16>, vector<128x128xf32> -> vector<128x128xf32>
    %c0_3 = arith.constant 0 : index
    %c0_4 = arith.constant 0 : index
    %4 = vector.load %arg3[%c0_3, %c0_4] : memref<1x128xf32, #tpu.memory_space<vmem>>, vector<1x128xf32>
    %5 = vector.broadcast %4 : vector<1x128xf32> to vector<128x128xf32>
    %6 = arith.addf %3, %5 : vector<128x128xf32>
    %cst_5 = arith.constant 0.000000e+00 : f32
    %7 = vector.broadcast %cst_5 : f32 to vector<128x128xf32>
    %8 = arith.maximumf %6, %7 : vector<128x128xf32>
    %9 = arith.truncf %8 : vector<128x128xf32> to vector<128x128xbf16>
    %c0_6 = arith.constant 0 : index
    %c0_7 = arith.constant 0 : index
    %10 = vector.load %arg4[%c0_6, %c0_7] : memref<128x128xbf16, #tpu.memory_space<vmem>>, vector<128x128xbf16>
    %cst_8 = arith.constant dense<0.000000e+00> : vector<128x128xf32>
    %11 = tpu.matmul %9, %10, %cst_8 {dimension_numbers = #tpu.dot_dimension_numbers<[1], [0], [0], [1], [0, 0, 1, 1], [], []>} : vector<128x128xbf16>, vector<128x128xbf16>, vector<128x128xf32> -> vector<128x128xf32>
    %c0_9 = arith.constant 0 : index
    %c0_10 = arith.constant 0 : index
    %12 = vector.load %arg5[%c0_9, %c0_10] : memref<1x128xf32, #tpu.memory_space<vmem>>, vector<1x128xf32>
    %13 = vector.broadcast %12 : vector<1x128xf32> to vector<128x128xf32>
    %14 = arith.addf %11, %13 : vector<128x128xf32>
    %15 = tpu.reduce_index %14 {axis = 1 : i32, kind = #tpu.reduction_kind<arg_max>} : vector<128x128xf32> -> vector<128xi32>
    %16 = vector.shape_cast %15 : vector<128xi32> to vector<1x1x128xi32>
    %c0_11 = arith.constant 0 : index
    %c0_12 = arith.constant 0 : index
    %c0_13 = arith.constant 0 : index
    %17 = vector.load %arg6[%c0_11, %c0_12, %c0_13] : memref<1x1x128xi32, #tpu.memory_space<vmem>>, vector<1x1x128xi32>
    tpu.vector_store %arg6[%c0_11, %c0_12, %c0_13], %16 {strides = array<i32>} : memref<1x1x128xi32, #tpu.memory_space<vmem>>, vector<1x1x128xi32>,
    return
  }
  func.func @transform_0(%arg0: i32) -> (i32, i32) {
    %c0_i32 = arith.constant 0 : i32
    %c0_i32_0 = arith.constant 0 : i32
    return %arg0, %c0_i32 : i32, i32
  }
  func.func @transform_1(%arg0: i32) -> (i32, i32) {
    %c0_i32 = arith.constant 0 : i32
    %c0_i32_0 = arith.constant 0 : i32
    %c0_i32_1 = arith.constant 0 : i32
    return %c0_i32, %c0_i32_0 : i32, i32
  }
  func.func @transform_2(%arg0: i32) -> (i32, i32) {
    %c0_i32 = arith.constant 0 : i32
    %c0_i32_0 = arith.constant 0 : i32
    %c0_i32_1 = arith.constant 0 : i32
    return %c0_i32, %c0_i32_0 : i32, i32
  }
  func.func @transform_3(%arg0: i32) -> (i32, i32) {
    %c0_i32 = arith.constant 0 : i32
    %c0_i32_0 = arith.constant 0 : i32
    %c0_i32_1 = arith.constant 0 : i32
    return %c0_i32, %c0_i32_0 : i32, i32
  }
  func.func @transform_4(%arg0: i32) -> (i32, i32) {
    %c0_i32 = arith.constant 0 : i32
    %c0_i32_0 = arith.constant 0 : i32
    %c0_i32_1 = arith.constant 0 : i32
    return %c0_i32, %c0_i32_0 : i32, i32
  }
  func.func @transform_5(%arg0: i32) -> (i32, i32, i32) {
    %c0_i32 = arith.constant 0 : i32
    %c0_i32_0 = arith.constant 0 : i32
    %c0_i32_1 = arith.constant 0 : i32
    return %arg0, %c0_i32, %c0_i32_0 : i32, i32, i32
  }
}

</mosaic_0001>

<llo_original>
// kernel: mlp_head_forward.1
$region0: #{mlp_head_forward.1}
  #allocation0 [shape = 'u32[]', space=smem, size = 0x4, offset = 0x4, fixed_abs, tag = 'smem constant byte address 0x4 - core index']
  #allocation1 [shape = 'u32[144,128]{1,0:T(1,128)}', space=vmem, size = 0x12000, scoped, tag = 'internal scratch']
  %s0 = inlined_call_operand.hbm [shape: f32[16,32], index: 0, kind: input, shape index: {}]
  %s1 = inlined_call_operand.hbm [shape: bf16[32,128], index: 1, kind: input, shape index: {}]
  %s2 = inlined_call_operand.vmem [shape: f32[1,128], index: 2, kind: input, shape index: {}]
  %s3 = inlined_call_operand.hbm [shape: bf16[128,128], index: 3, kind: input, shape index: {}]
  %s4 = inlined_call_operand.vmem [shape: f32[1,128], index: 4, kind: input, shape index: {}]
  %s5 = inlined_call_operand.vmem [shape: s32[1,1,128], index: 5, kind: output, shape index: {}]
  %s6 = sld [smem:[#allocation0]]
  $region42: #{mlp_head_forward.1} parent=0
    _
  %s8 = ssub.s32 1, %s6
  %s9 = scalar_select 0, %s8, %s6
  $region1: #{mlp_head_forward.1} parent=0
    #allocation2 [shape = 'u8[65536]{0}', space=vmem, size = 0x10000, scoped, tag = 'input window, operand 0, single buffered']
    #allocation3 [shape = 's32[1]{0}', space=sflag, size = 0x4, scoped, tag = 'scoped memory for mlp_head_forward.1']
    #allocation4 [shape = 'u8[8192]{0}', space=vmem, size = 0x2000, scoped, tag = 'input window, operand 1, single buffered']
    #allocation5 [shape = 's32[1]{0}', space=sflag, size = 0x4, scoped, tag = 'scoped memory for mlp_head_forward.1']
    #allocation6 [shape = 'u8[32768]{0}', space=vmem, size = 0x8000, scoped, tag = 'input window, operand 3, single buffered']
    %10 = vsyncpa [#allocation3], 0
    %11 = vsyncpa [#allocation5], 0
    // Predicated region
    $region2: #{mlp_head_forward.1} parent=1 // pred_check
      _
    $region3: #{mlp_head_forward.1} parent=1 // pred_check_branch
      %13 = sbr.rel (0) target = $region5
    $region4: #{mlp_head_forward.1} parent=1 // pred_region
      %s15 = ssub.s32 2048, 256
      %16 = vsyncadd [#allocation3], %s15
      %s17 = sshll.u32 [#allocation2], 4
      %s18 = int_to_ptr.vmem [resolvable:$true] %s17
      %23 = dma.hbm_to_vmem [thread:$0]  %s0, 256, %s18, [#allocation3], 128, 128, 8
    $region5: #{mlp_head_forward.1} parent=1 // pred_fallthru
      _
    // Predicated region
    $region6: #{mlp_head_forward.1} parent=1 // pred_check
      _
    $region7: #{mlp_head_forward.1} parent=1 // pred_check_branch
      %25 = sbr.rel (0) target = $region9
    $region8: #{mlp_head_forward.1} parent=1 // pred_region
      %s27 = ssub.s32 256, 256
      %28 = vsyncadd [#allocation5], %s27
      %s29 = sshll.u32 [#allocation4], 4
      %s30 = int_to_ptr.vmem [resolvable:$true] %s29
      %35 = dma.hbm_to_vmem [thread:$0]  %s1, 256, %s30, [#allocation5], 64, 64, 4
    $region9: #{mlp_head_forward.1} parent=1 // pred_fallthru
      _
    // Predicated region
    $region10: #{mlp_head_forward.1} parent=1 // pred_check
      _
    $region11: #{mlp_head_forward.1} parent=1 // pred_check_branch
      %37 = sbr.rel (0) target = $region13
    $region12: #{mlp_head_forward.1} parent=1 // pred_region
      _
    $region13: #{mlp_head_forward.1} parent=1 // pred_fallthru
      _
    // Predicated region
    $region14: #{mlp_head_forward.1} parent=1 // pred_check
      _
    $region15: #{mlp_head_forward.1} parent=1 // pred_check_branch
      %39 = sbr.rel (0) target = $region17
    $region16: #{mlp_head_forward.1} parent=1 // pred_region
      %s41 = ssub.s32 1024, 1024
      %42 = vsyncadd [#allocation5], %s41
      %s43 = sshll.u32 [#allocation6], 4
      %s44 = int_to_ptr.vmem [resolvable:$true] %s43
      %49 = dma.hbm_to_vmem [thread:$0]  %s3, 1024, %s44, [#allocation5], 64, 64, 4
    $region17: #{mlp_head_forward.1} parent=1 // pred_fallthru
      _
    // Predicated region
    $region18: #{mlp_head_forward.1} parent=1 // pred_check
      _
    $region19: #{mlp_head_forward.1} parent=1 // pred_check_branch
      %51 = sbr.rel (0) target = $region21
    $region20: #{mlp_head_forward.1} parent=1 // pred_region
      _
    $region21: #{mlp_head_forward.1} parent=1 // pred_fallthru
      _
    // Predicated region
    $region22: #{mlp_head_forward.1} parent=1 // pred_check
      _
    $region23: #{mlp_head_forward.1} parent=1 // pred_check_branch
      %53 = sbr.rel (0) target = $region25
    $region24: #{mlp_head_forward.1} parent=1 // pred_region
      %54 = dma.done [#allocation3], 2048
    $region25: #{mlp_head_forward.1} parent=1 // pred_fallthru
      _
    // Predicated region
    $region26: #{mlp_head_forward.1} parent=1 // pred_check
      _
    $region27: #{mlp_head_forward.1} parent=1 // pred_check_branch
      %56 = sbr.rel (0) target = $region29
    $region28: #{mlp_head_forward.1} parent=1 // pred_region
      %57 = dma.done [#allocation5], 256
    $region29: #{mlp_head_forward.1} parent=1 // pred_fallthru
      _
    // Predicated region
    $region30: #{mlp_head_forward.1} parent=1 // pred_check
      _
    $region31: #{mlp_head_forward.1} parent=1 // pred_check_branch
      %59 = sbr.rel (0) target = $region33
    $region32: #{mlp_head_forward.1} parent=1 // pred_region
      %60 = dma.done [#allocation5], 1024
    $region33: #{mlp_head_forward.1} parent=1 // pred_fallthru
      _
    %v62 = vld [vmem:[#allocation2] sm:$0xff]
    %v63 = vld [vmem:[#allocation2 + $0x8] sm:$0xff]
    %v64 = vld [vmem:[#allocation2 + $0x10] sm:$0xff]
    %v65 = vld [vmem:[#allocation2 + $0x18] sm:$0xff]
    %v66 = vld [vmem:[#allocation2 + $0x20] sm:$0xff]
    %v67 = vld [vmem:[#allocation2 + $0x28] sm:$0xff]
    %v68 = vld [vmem:[#allocation2 + $0x30] sm:$0xff]
    %v69 = vld [vmem:[#allocation2 + $0x38] sm:$0xff]
    %v70 = vld [vmem:[#allocation2 + $0x40] sm:$0xff]
    %v71 = vld [vmem:[#allocation2 + $0x48] sm:$0xff]
    %v72 = vld [vmem:[#allocation2 + $0x50] sm:$0xff]
    %v73 = vld [vmem:[#allocation2 + $0x58] sm:$0xff]
    %v74 = vld [vmem:[#allocation2 + $0x60] sm:$0xff]
    %v75 = vld [vmem:[#allocation2 + $0x68] sm:$0xff]
    %v76 = vld [vmem:[#allocation2 + $0x70] sm:$0xff]
    %v77 = vld [vmem:[#allocation2 + $0x78] sm:$0xff]
    %v78 = vpack.c.bf16 %v63, %v62
    %v79 = vpack.c.bf16 %v65, %v64
    %v80 = vpack.c.bf16 %v67, %v66
    %v81 = vpack.c.bf16 %v69, %v68
    %v82 = vpack.c.bf16 %v71, %v70
    %v83 = vpack.c.bf16 %v73, %v72
    %v84 = vpack.c.bf16 %v75, %v74
    %v85 = vpack.c.bf16 %v77, %v76
    %v86 = vld [vmem:[#allocation4] sm:$0xf]
    %v87 = vld [vmem:[#allocation4 + $0x4] sm:$0xf]
    %v88 = vld [vmem:[#allocation4 + $0x8] sm:$0xf]
    %v89 = vld [vmem:[#allocation4 + $0xc] sm:$0xf]
    %v90 = vld [vmem:[%s2] sm:$0x1]
    %v92 = vlaneseq
    %v93 = vshrl.u32 %v92, 7
    %v94 = vsub.s32 0, %v93
    %v95 = vrot.slane %v90, %v94
    %v101 = vunpack.c.l.b16 %v86
    %v102 = vunpack.c.l.b16 %v87
    %v103 = vunpack.c.l.b16 %v88
    %v104 = vunpack.c.l.b16 %v89
    %v105 = vpack.c.b16 %v102, %v101
    %v106 = vpack.c.b16 %v104, %v103
    %vm109 = vcmask 261120
    %v111 = vsel %vm109, %v78, 0
    %v114 = vsel %vm109, %v79, 0
    %v117 = vsel %vm109, %v80, 0
    %v120 = vsel %vm109, %v81, 0
    %v123 = vsel %vm109, %v82, 0
    %v126 = vsel %vm109, %v83, 0
    %v129 = vsel %vm109, %v84, 0
    %v132 = vsel %vm109, %v85, 0
    %134 = vmatprep.subr.bf16.mxu0 0
    %135 = vmatpush1.bf16.msra.mxu0 %v105
    %136 = vmatprep.subr.bf16.mxu0 0
    %137 = vmatpush1.bf16.msra.mxu0 %v106
    %138 = vmatprep.subr.bf16.mxu0 0
    %139 = vmatpush1.bf16.msra.mxu0 0
    %140 = vmatprep.subr.bf16.mxu0 0
    %141 = vmatpush1.bf16.msra.mxu0 0
    %142 = vmatprep.subr.bf16.mxu0 0
    %143 = vmatpush1.bf16.msra.mxu0 0
    %144 = vmatprep.subr.bf16.mxu0 0
    %145 = vmatpush1.bf16.msra.mxu0 0
    %146 = vmatprep.subr.bf16.mxu0 0
    %147 = vmatpush1.bf16.msra.mxu0 0
    %148 = vmatprep.subr.bf16.mxu0 0
    %149 = vmatpush1.bf16.msra.mxu0 0
    %150 = vmatprep.subr.bf16.mxu0 0
    %151 = vmatpush1.bf16.msra.mxu0 0
    %152 = vmatprep.subr.bf16.mxu0 0
    %153 = vmatpush1.bf16.msra.mxu0 0
    %154 = vmatprep.subr.bf16.mxu0 0
    %155 = vmatpush1.bf16.msra.mxu0 0
    %156 = vmatprep.subr.bf16.mxu0 0
    %157 = vmatpush1.bf16.msra.mxu0 0
    %158 = vmatprep.subr.bf16.mxu0 0
    %159 = vmatpush1.bf16.msra.mxu0 0
    %160 = vmatprep.subr.bf16.mxu0 0
    %161 = vmatpush1.bf16.msra.mxu0 0
    %162 = vmatprep.subr.bf16.mxu0 0
    %163 = vmatpush1.bf16.msra.mxu0 0
    %164 = vmatprep.subr.bf16.mxu0 0
    %165 = vmatpush1.bf16.msra.mxu0 0
    %166 = vmatprep.mubr.bf16.mxu0 0
    %167 = vmatmul.mubr.bf16.gmra.mrb[0].mxu0 %v111
    %v168 = vpop.f32.mrb[0].mxu0
    %v169 = vadd.f32 %v95, %v168
    %v170 = vpop.f32.mrb[0].mxu0
    %v171 = vpop.f32.mrb[0].mxu0
    %v172 = vadd.f32 %v95, %v171
    %v173 = vpop.f32.mrb[0].mxu0
    %174 = vmatprep.mubr.bf16.mxu0 0
    %175 = vmatmul.mubr.bf16.gmra.mrb[0].mxu0 %v114
    %v176 = vpop.f32.mrb[0].mxu0
    %v177 = vadd.f32 %v95, %v176
    %v178 = vpop.f32.mrb[0].mxu0
    %v179 = vpop.f32.mrb[0].mxu0
    %v180 = vadd.f32 %v95, %v179
    %v181 = vpop.f32.mrb[0].mxu0
    %182 = vmatprep.mubr.bf16.mxu0 0
    %183 = vmatmul.mubr.bf16.gmra.mrb[0].mxu0 %v117
    %v184 = vpop.f32.mrb[0].mxu0
    %v185 = vadd.f32 %v95, %v184
    %v186 = vpop.f32.mrb[0].mxu0
    %v187 = vpop.f32.mrb[0].mxu0
    %v188 = vadd.f32 %v95, %v187
    %v189 = vpop.f32.mrb[0].mxu0
    %190 = vmatprep.mubr.bf16.mxu0 0
    %191 = vmatmul.mubr.bf16.gmra.mrb[0].mxu0 %v120
    %v192 = vpop.f32.mrb[0].mxu0
    %v193 = vadd.f32 %v95, %v192
    %v194 = vpop.f32.mrb[0].mxu0
    %v195 = vpop.f32.mrb[0].mxu0
    %v196 = vadd.f32 %v95, %v195
    %v197 = vpop.f32.mrb[0].mxu0
    %198 = vmatprep.mubr.bf16.mxu0 0
    %199 = vmatmul.mubr.bf16.gmra.mrb[0].mxu0 %v123
    %v200 = vpop.f32.mrb[0].mxu0
    %v201 = vadd.f32 %v95, %v200
    %v202 = vpop.f32.mrb[0].mxu0
    %v203 = vpop.f32.mrb[0].mxu0
    %v204 = vadd.f32 %v95, %v203
    %v205 = vpop.f32.mrb[0].mxu0
    %206 = vmatprep.mubr.bf16.mxu0 0
    %207 = vmatmul.mubr.bf16.gmra.mrb[0].mxu0 %v126
    %v208 = vpop.f32.mrb[0].mxu0
    %v209 = vadd.f32 %v95, %v208
    %v210 = vpop.f32.mrb[0].mxu0
    %v211 = vpop.f32.mrb[0].mxu0
    %v212 = vadd.f32 %v95, %v211
    %v213 = vpop.f32.mrb[0].mxu0
    %214 = vmatprep.mubr.bf16.mxu0 0
    %215 = vmatmul.mubr.bf16.gmra.mrb[0].mxu0 %v129
    %v216 = vpop.f32.mrb[0].mxu0
    %v217 = vadd.f32 %v95, %v216
    %v218 = vpop.f32.mrb[0].mxu0
    %v219 = vpop.f32.mrb[0].mxu0
    %v220 = vadd.f32 %v95, %v219
    %v221 = vpop.f32.mrb[0].mxu0
    %222 = vmatprep.mubr.bf16.mxu0 0
    %223 = vmatmul.mubr.bf16.gmra.mrb[0].mxu0 %v132
    %v224 = vpop.f32.mrb[0].mxu0
    %v225 = vadd.f32 %v95, %v224
    %v226 = vpop.f32.mrb[0].mxu0
    %v227 = vpop.f32.mrb[0].mxu0
    %v228 = vadd.f32 %v95, %v227
    %v229 = vpop.f32.mrb[0].mxu0
    %230 = vdwg.mxu0
    %v231 = vmax.f32 %v169, 0.0
    %v232 = vmax.f32 %v172, 0.0
    %v233 = vmax.f32 %v177, 0.0
    %v234 = vmax.f32 %v180, 0.0
    %v235 = vmax.f32 %v185, 0.0
    %v236 = vmax.f32 %v188, 0.0
    %v237 = vmax.f32 %v193, 0.0
    %v238 = vmax.f32 %v196, 0.0
    %v239 = vmax.f32 %v201, 0.0
    %v240 = vmax.f32 %v204, 0.0
    %v241 = vmax.f32 %v209, 0.0
    %v242 = vmax.f32 %v212, 0.0
    %v243 = vmax.f32 %v217, 0.0
    %v244 = vmax.f32 %v220, 0.0
    %v245 = vmax.f32 %v225, 0.0
    %v246 = vmax.f32 %v228, 0.0
    %v247 = vpack.c.bf16 %v232, %v231
    %v248 = vpack.c.bf16 %v234, %v233
    %v249 = vpack.c.bf16 %v236, %v235
    %v250 = vpack.c.bf16 %v238, %v237
    %v251 = vpack.c.bf16 %v240, %v239
    %v252 = vpack.c.bf16 %v242, %v241
    %v253 = vpack.c.bf16 %v244, %v243
    %v254 = vpack.c.bf16 %v246, %v245
    %v255 = vld [vmem:[#allocation6] sm:$0xf]
    %v256 = vld [vmem:[#allocation6 + $0x4] sm:$0xf]
    %v257 = vld [vmem:[#allocation6 + $0x8] sm:$0xf]
    %v258 = vld [vmem:[#allocation6 + $0xc] sm:$0xf]
    %v259 = vld [vmem:[#allocation6 + $0x10] sm:$0xf]
    %v260 = vld [vmem:[#allocation6 + $0x14] sm:$0xf]
    %v261 = vld [vmem:[#allocation6 + $0x18] sm:$0xf]
    %v262 = vld [vmem:[#allocation6 + $0x1c] sm:$0xf]
    %v263 = vld [vmem:[#allocation6 + $0x20] sm:$0xf]
    %v264 = vld [vmem:[#allocation6 + $0x24] sm:$0xf]
    %v265 = vld [vmem:[#allocation6 + $0x28] sm:$0xf]
    %v266 = vld [vmem:[#allocation6 + $0x2c] sm:$0xf]
    %v267 = vld [vmem:[#allocation6 + $0x30] sm:$0xf]
    %v268 = vld [vmem:[#allocation6 + $0x34] sm:$0xf]
    %v269 = vld [vmem:[#allocation6 + $0x38] sm:$0xf]
    %v270 = vld [vmem:[#allocation6 + $0x3c] sm:$0xf]
    %v271 = vld [vmem:[%s4] sm:$0x1]
    %v273 = vlaneseq
    %v274 = vshrl.u32 %v273, 7
    %v275 = vsub.s32 0, %v274
    %v276 = vrot.slane %v271, %v275
    %v294 = vunpack.c.l.b16 %v255
    %v295 = vunpack.c.l.b16 %v256
    %v296 = vunpack.c.l.b16 %v257
    %v297 = vunpack.c.l.b16 %v258
    %v298 = vunpack.c.l.b16 %v259
    %v299 = vunpack.c.l.b16 %v260
    %v300 = vunpack.c.l.b16 %v261
    %v301 = vunpack.c.l.b16 %v262
    %v302 = vunpack.c.l.b16 %v263
    %v303 = vunpack.c.l.b16 %v264
    %v304 = vunpack.c.l.b16 %v265
    %v305 = vunpack.c.l.b16 %v266
    %v306 = vunpack.c.l.b16 %v267
    %v307 = vunpack.c.l.b16 %v268
    %v308 = vunpack.c.l.b16 %v269
    %v309 = vunpack.c.l.b16 %v270
    %v310 = vpack.c.b16 %v295, %v294
    %v311 = vpack.c.b16 %v297, %v296
    %v312 = vpack.c.b16 %v299, %v298
    %v313 = vpack.c.b16 %v301, %v300
    %v314 = vpack.c.b16 %v303, %v302
    %v315 = vpack.c.b16 %v305, %v304
    %v316 = vpack.c.b16 %v307, %v306
    %v317 = vpack.c.b16 %v309, %v308
    %326 = vmatprep.subr.bf16.mxu0 0
    %327 = vmatpush1.bf16.msra.mxu0 %v310
    %328 = vmatprep.subr.bf16.mxu0 0
    %329 = vmatpush1.bf16.msra.mxu0 %v311
    %330 = vmatprep.subr.bf16.mxu0 0
    %331 = vmatpush1.bf16.msra.mxu0 %v312
    %332 = vmatprep.subr.bf16.mxu0 0
    %333 = vmatpush1.bf16.msra.mxu0 %v313
    %334 = vmatprep.subr.bf16.mxu0 0
    %335 = vmatpush1.bf16.msra.mxu0 %v314
    %336 = vmatprep.subr.bf16.mxu0 0
    %337 = vmatpush1.bf16.msra.mxu0 %v315
    %338 = vmatprep.subr.bf16.mxu0 0
    %339 = vmatpush1.bf16.msra.mxu0 %v316
    %340 = vmatprep.subr.bf16.mxu0 0
    %341 = vmatpush1.bf16.msra.mxu0 %v317
    %342 = vmatprep.subr.bf16.mxu0 0
    %343 = vmatpush1.bf16.msra.mxu0 0
    %344 = vmatprep.subr.bf16.mxu0 0
    %345 = vmatpush1.bf16.msra.mxu0 0
    %346 = vmatprep.subr.bf16.mxu0 0
    %347 = vmatpush1.bf16.msra.mxu0 0
    %348 = vmatprep.subr.bf16.mxu0 0
    %349 = vmatpush1.bf16.msra.mxu0 0
    %350 = vmatprep.subr.bf16.mxu0 0
    %351 = vmatpush1.bf16.msra.mxu0 0
    %352 = vmatprep.subr.bf16.mxu0 0
    %353 = vmatpush1.bf16.msra.mxu0 0
    %354 = vmatprep.subr.bf16.mxu0 0
    %355 = vmatpush1.bf16.msra.mxu0 0
    %356 = vmatprep.subr.bf16.mxu0 0
    %357 = vmatpush1.bf16.msra.mxu0 0
    %358 = vmatprep.mubr.bf16.mxu0 0
    %359 = vmatmul.mubr.bf16.gmra.mrb[0].mxu0 %v247
    %v360 = vpop.f32.mrb[0].mxu0
    %v361 = vadd.f32 %v276, %v360
    %v362 = vpop.f32.mrb[0].mxu0
    %v363 = vpop.f32.mrb[0].mxu0
    %v364 = vadd.f32 %v276, %v363
    %v365 = vpop.f32.mrb[0].mxu0
    %366 = vmatprep.mubr.bf16.mxu0 0
    %367 = vmatmul.mubr.bf16.gmra.mrb[0].mxu0 %v248
    %v368 = vpop.f32.mrb[0].mxu0
    %v369 = vadd.f32 %v276, %v368
    %v370 = vpop.f32.mrb[0].mxu0
    %v371 = vpop.f32.mrb[0].mxu0
    %v372 = vadd.f32 %v276, %v371
    %v373 = vpop.f32.mrb[0].mxu0
    %374 = vmatprep.mubr.bf16.mxu0 0
    %375 = vmatmul.mubr.bf16.gmra.mrb[0].mxu0 %v249
    %v376 = vpop.f32.mrb[0].mxu0
    %v377 = vadd.f32 %v276, %v376
    %v378 = vpop.f32.mrb[0].mxu0
    %v379 = vpop.f32.mrb[0].mxu0
    %v380 = vadd.f32 %v276, %v379
    %v381 = vpop.f32.mrb[0].mxu0
    %382 = vmatprep.mubr.bf16.mxu0 0
    %383 = vmatmul.mubr.bf16.gmra.mrb[0].mxu0 %v250
    %v384 = vpop.f32.mrb[0].mxu0
    %v385 = vadd.f32 %v276, %v384
    %v386 = vpop.f32.mrb[0].mxu0
    %v387 = vpop.f32.mrb[0].mxu0
    %v388 = vadd.f32 %v276, %v387
    %v389 = vpop.f32.mrb[0].mxu0
    %390 = vmatprep.mubr.bf16.mxu0 0
    %391 = vmatmul.mubr.bf16.gmra.mrb[0].mxu0 %v251
    %v392 = vpop.f32.mrb[0].mxu0
    %v393 = vadd.f32 %v276, %v392
    %v394 = vpop.f32.mrb[0].mxu0
    %v395 = vpop.f32.mrb[0].mxu0
    %v396 = vadd.f32 %v276, %v395
    %v397 = vpop.f32.mrb[0].mxu0
    %398 = vmatprep.mubr.bf16.mxu0 0
    %399 = vmatmul.mubr.bf16.gmra.mrb[0].mxu0 %v252
    %v400 = vpop.f32.mrb[0].mxu0
    %v401 = vadd.f32 %v276, %v400
    %v402 = vpop.f32.mrb[0].mxu0
    %v403 = vpop.f32.mrb[0].mxu0
    %v404 = vadd.f32 %v276, %v403
    %v405 = vpop.f32.mrb[0].mxu0
    %406 = vmatprep.mubr.bf16.mxu0 0
    %407 = vmatmul.mubr.bf16.gmra.mrb[0].mxu0 %v253
    %v408 = vpop.f32.mrb[0].mxu0
    %v409 = vadd.f32 %v276, %v408
    %v410 = vpop.f32.mrb[0].mxu0
    %v411 = vpop.f32.mrb[0].mxu0
    %v412 = vadd.f32 %v276, %v411
    %v413 = vpop.f32.mrb[0].mxu0
    %414 = vmatprep.mubr.bf16.mxu0 0
    %415 = vmatmul.mubr.bf16.gmra.mrb[0].mxu0 %v254
    %v416 = vpop.f32.mrb[0].mxu0
    %v417 = vadd.f32 %v276, %v416
    %v418 = vpop.f32.mrb[0].mxu0
    %v419 = vpop.f32.mrb[0].mxu0
    %v420 = vadd.f32 %v276, %v419
    %v421 = vpop.f32.mrb[0].mxu0
    %422 = vdwg.mxu0
    %423 = vmax.index.xlane.f32.xlu0 %v361
    %v424 = vpop.xlane.xlu0 %423
    %425 = vmax.index.xlane.f32.xlu0 %v364
    %v426 = vpop.xlane.xlu0 %425
    %427 = vmax.index.xlane.f32.xlu0 %v369
    %v428 = vpop.xlane.xlu0 %427
    %429 = vmax.index.xlane.f32.xlu0 %v372
    %v430 = vpop.xlane.xlu0 %429
    %431 = vmax.index.xlane.f32.xlu0 %v377
    %v432 = vpop.xlane.xlu0 %431
    %433 = vmax.index.xlane.f32.xlu0 %v380
    %v434 = vpop.xlane.xlu0 %433
    %435 = vmax.index.xlane.f32.xlu0 %v385
    %v436 = vpop.xlane.xlu0 %435
    %437 = vmax.index.xlane.f32.xlu0 %v388
    %v438 = vpop.xlane.xlu0 %437
    %439 = vmax.index.xlane.f32.xlu0 %v393
    %v440 = vpop.xlane.xlu0 %439
    %441 = vmax.index.xlane.f32.xlu0 %v396
    %v442 = vpop.xlane.xlu0 %441
    %443 = vmax.index.xlane.f32.xlu0 %v401
    %v444 = vpop.xlane.xlu0 %443
    %445 = vmax.index.xlane.f32.xlu0 %v404
    %v446 = vpop.xlane.xlu0 %445
    %447 = vmax.index.xlane.f32.xlu0 %v409
    %v448 = vpop.xlane.xlu0 %447
    %449 = vmax.index.xlane.f32.xlu0 %v412
    %v450 = vpop.xlane.xlu0 %449
    %451 = vmax.index.xlane.f32.xlu0 %v417
    %v452 = vpop.xlane.xlu0 %451
    %453 = vmax.index.xlane.f32.xlu0 %v420
    %v454 = vpop.xlane.xlu0 %453
    %v455 = vlaneseq
    %v456 = vand.u32 %v455, 127
    %v457 = vlaneseq
    %v458 = vshrl.u32 %v457, 7
    %v459 = vsub.s32 %v456, %v458
    %v460 = vrot.slane %v424, %v459
    %v461 = vadd.s32 %v456, 4294967288
    %v462 = vlaneseq
    %v463 = vshrl.u32 %v462, 7
    %v464 = vsub.s32 %v461, %v463
    %v465 = vrot.slane %v426, %v464
    %vm466 = vcmask 130112
    %v467 = vsel %vm466, %v465, %v460
    %v468 = vadd.s32 %v456, 4294967280
    %v469 = vlaneseq
    %v470 = vshrl.u32 %v469, 7
    %v471 = vsub.s32 %v468, %v470
    %v472 = vrot.slane %v428, %v471
    %vm473 = vcmask 195712
    %v474 = vsel %vm473, %v472, %v467
    %v475 = vadd.s32 %v456, 4294967272
    %v476 = vlaneseq
    %v477 = vshrl.u32 %v476, 7
    %v478 = vsub.s32 %v475, %v477
    %v479 = vrot.slane %v430, %v478
    %vm480 = vcmask 261312
    %v481 = vsel %vm480, %v479, %v474
    %v482 = vadd.s32 %v456, 4294967264
    %v483 = vlaneseq
    %v484 = vshrl.u32 %v483, 7
    %v485 = vsub.s32 %v482, %v484
    %v486 = vrot.slane %v432, %v485
    %vm487 = vcmask 326912
    %v488 = vsel %vm487, %v486, %v481
    %v489 = vadd.s32 %v456, 4294967256
    %v490 = vlaneseq
    %v491 = vshrl.u32 %v490, 7
    %v492 = vsub.s32 %v489, %v491
    %v493 = vrot.slane %v434, %v492
    %vm494 = vcmask 392512
    %v495 = vsel %vm494, %v493, %v488
    %v496 = vadd.s32 %v456, 4294967248
    %v497 = vlaneseq
    %v498 = vshrl.u32 %v497, 7
    %v499 = vsub.s32 %v496, %v498
    %v500 = vrot.slane %v436, %v499
    %vm501 = vcmask 458112
    %v502 = vsel %vm501, %v500, %v495
    %v503 = vadd.s32 %v456, 4294967240
    %v504 = vlaneseq
    %v505 = vshrl.u32 %v504, 7
    %v506 = vsub.s32 %v503, %v505
    %v507 = vrot.slane %v438, %v506
    %vm508 = vcmask 523712
    %v509 = vsel %vm508, %v507, %v502
    %v510 = vadd.s32 %v456, 4294967232
    %v511 = vlaneseq
    %v512 = vshrl.u32 %v511, 7
    %v513 = vsub.s32 %v510, %v512
    %v514 = vrot.slane %v440, %v513
    %vm515 = vcmask 589312
    %v516 = vsel %vm515, %v514, %v509
    %v517 = vadd.s32 %v456, 4294967224
    %v518 = vlaneseq
    %v519 = vshrl.u32 %v518, 7
    %v520 = vsub.s32 %v517, %v519
    %v521 = vrot.slane %v442, %v520
    %vm522 = vcmask 654912
    %v523 = vsel %vm522, %v521, %v516
    %v524 = vadd.s32 %v456, 4294967216
    %v525 = vlaneseq
    %v526 = vshrl.u32 %v525, 7
    %v527 = vsub.s32 %v524, %v526
    %v528 = vrot.slane %v444, %v527
    %vm529 = vcmask 720512
    %v530 = vsel %vm529, %v528, %v523
    %v531 = vadd.s32 %v456, 4294967208
    %v532 = vlaneseq
    %v533 = vshrl.u32 %v532, 7
    %v534 = vsub.s32 %v531, %v533
    %v535 = vrot.slane %v446, %v534
    %vm536 = vcmask 786112
    %v537 = vsel %vm536, %v535, %v530
    %v538 = vadd.s32 %v456, 4294967200
    %v539 = vlaneseq
    %v540 = vshrl.u32 %v539, 7
    %v541 = vsub.s32 %v538, %v540
    %v542 = vrot.slane %v448, %v541
    %vm543 = vcmask 851712
    %v544 = vsel %vm543, %v542, %v537
    %v545 = vadd.s32 %v456, 4294967192
    %v546 = vlaneseq
    %v547 = vshrl.u32 %v546, 7
    %v548 = vsub.s32 %v545, %v547
    %v549 = vrot.slane %v450, %v548
    %vm550 = vcmask 917312
    %v551 = vsel %vm550, %v549, %v544
    %v552 = vadd.s32 %v456, 4294967184
    %v553 = vlaneseq
    %v554 = vshrl.u32 %v553, 7
    %v555 = vsub.s32 %v552, %v554
    %v556 = vrot.slane %v452, %v555
    %vm557 = vcmask 982912
    %v558 = vsel %vm557, %v556, %v551
    %v559 = vadd.s32 %v456, 4294967176
    %v560 = vlaneseq
    %v561 = vshrl.u32 %v560, 7
    %v562 = vsub.s32 %v559, %v561
    %v563 = vrot.slane %v454, %v562
    %vm564 = vcmask 1048512
    %v565 = vsel %vm564, %v563, %v558
    %566 = vst [vmem:[%s5] sm:$0x1] %v565
    // Predicated region
    $region34: #{mlp_head_forward.1} parent=1 // pred_check
      _
    $region35: #{mlp_head_forward.1} parent=1 // pred_check_branch
      %568 = sbr.rel (0) target = $region37
    $region36: #{mlp_head_forward.1} parent=1 // pred_region
      _
    $region37: #{mlp_head_forward.1} parent=1 // pred_fallthru
      _
    // Predicated region
    $region38: #{mlp_head_forward.1} parent=1 // pred_check
      _
    $region39: #{mlp_head_forward.1} parent=1 // pred_check_branch
      %570 = sbr.rel (0) target = $region41
    $region40: #{mlp_head_forward.1} parent=1 // pred_region
      _
    $region41: #{mlp_head_forward.1} parent=1 // pred_fallthru
      _
    %571 = vsyncpa [#allocation3], 1
    %572 = vsyncpa [#allocation5], 1

</llo_original>
